<compile_context>
chip_gen: v6e
topology: v6e:2x2x1
jax: 0.10.0
libtpu: 0.0.40
codegen_flags: <defaults>
</compile_context>

<pallas_src>
import jax
import jax.numpy as jnp
from jax import lax
from jax.experimental import pallas as pl
from jax.experimental.pallas import tpu as pltpu


# --------------------------------------------------------------------------
# Small planning helpers.
# --------------------------------------------------------------------------
def _round_up(x: int, m: int) -> int:
    return (x + m - 1) // m * m


def _cdiv(a: int, b: int) -> int:
    return (a + b - 1) // b


def _sublane_multiple(dtype) -> int:
    # f32 -> 8 sublanes, bf16 -> 16, int8/fp8 -> 32
    return 8 * (4 // jnp.dtype(dtype).itemsize)


def _balanced_tile(n: int, target: int, mult: int) -> int:
    """Tile size near `target` that minimizes tail padding of `n` rows."""
    n = max(int(n), 1)
    n_tiles = max(1, _cdiv(n, target))
    return _round_up(_cdiv(n, n_tiles), mult)


def _vmem_budget_bytes() -> int:
    """Per-core VMEM budget with ~20% headroom (generation aware)."""
    cap = None
    try:
        cap = getattr(pltpu.get_tpu_info(), "vmem_capacity_bytes", None)
    except Exception:
        cap = None
    if not cap:
        cap = 64 * 1024 * 1024          # conservative default (v7x per-TC)
    return int(cap) * 4 // 5            # ~51 MiB on v7x, ~102 MiB on v5e/v6e


def _max_matmul_coarse(dtype) -> int:
    """Roofline gate for the one-hot MXU gather path.

    The one-hot matmul spends ~2*n_coarse MACs per gathered element vs a few
    bytes of HBM traffic; f32 inputs additionally run multi-pass (HIGHEST)
    emulation on the bf16 MXU.  Beyond these sizes the DMA gather path stays
    memory-bound while the MXU path would not.
    """
    dt = jnp.dtype(dtype)
    if dt.itemsize <= 2:                # bf16 / fp8: native MXU rate
        return 1024
    return 256                          # f32 (HIGHEST precision emulation)


# --------------------------------------------------------------------------
# Fast path: coarse matrix resident in VMEM, tiled fine axis, MXU gather.
# --------------------------------------------------------------------------
def _unpool_tile_kernel(cluster_ref, coarse_ref, out_ref):
    """out_ref[(TQ, D)] = coarse_ref[cluster_ref[:, 0], :] via one-hot matmul."""
    idx = cluster_ref[...]                                   # (TQ, 1) int32
    tq = out_ref.shape[0]
    n_coarse = coarse_ref.shape[0]
    onehot = (idx == lax.broadcasted_iota(jnp.int32, (tq, n_coarse), 1))
    if coarse_ref.dtype == jnp.float32:
        # HIGHEST keeps the f32 gather (effectively) exact for 0/1 weights.
        onehot = onehot.astype(jnp.float32)
        precision = lax.Precision.HIGHEST
    else:
        # bf16/narrow dtypes: native MXU rate, f32 accumulation is exact for
        # a single nonzero 1.0 weight per row.
        onehot = onehot.astype(coarse_ref.dtype)
        precision = lax.Precision.DEFAULT
    gathered = lax.dot_general(
        onehot, coarse_ref[...],
        dimension_numbers=(((1,), (0,)), ((), ())),
        precision=precision,
        preferred_element_type=jnp.float32,
    )
    out_ref[...] = gathered.astype(out_ref.dtype)


def _unpool_resident(coarse_feature: jax.Array, cluster: jax.Array,
                     tq: int, vmem_limit: int) -> jax.Array:
    n_fine = cluster.shape[0]
    n_coarse, d = coarse_feature.shape
    dtype = coarse_feature.dtype

    num_tiles = _cdiv(n_fine, tq)
    n_fine_pad = num_tiles * tq

    # Pad only the tiny cluster vector (index 0 is always valid); the output
    # keeps its natural (n_fine, d) shape -> last block is clipped by Pallas,
    # no post-kernel slice pass over the fine matrix.
    cluster_pad = jnp.zeros((n_fine_pad, 1), jnp.int32)
    cluster_pad = cluster_pad.at[:n_fine, 0].set(cluster.astype(jnp.int32))

    return pl.pallas_call(
        _unpool_tile_kernel,
        out_shape=jax.ShapeDtypeStruct((n_fine, d), dtype),
        grid_spec=pltpu.PrefetchScalarGridSpec(
            num_scalar_prefetch=0,
            grid=(num_tiles,),
            in_specs=[
                # per-tile fine->coarse assignment
                pl.BlockSpec((tq, 1), lambda i: (i, 0)),
                # constant block index -> coarse matrix DMA'd once, resident
                pl.BlockSpec((n_coarse, d), lambda i: (0, 0)),
            ],
            out_specs=pl.BlockSpec((tq, d), lambda i: (i, 0)),
        ),
        compiler_params=pltpu.CompilerParams(
            dimension_semantics=("parallel",),
            vmem_limit_bytes=vmem_limit,
        ),
    )(cluster_pad, coarse_feature)


# --------------------------------------------------------------------------
# Fallback: tiled manual DMA gather (coarse stays in HBM, any n_coarse).
# --------------------------------------------------------------------------
def _gather_tile_kernel(cluster_smem, coarse_hbm, out_ref, sem):
    tg = out_ref.shape[0]
    base = pl.program_id(0) * tg

    def issue(r, carry):
        idx = cluster_smem[base + r]
        pltpu.make_async_copy(
            coarse_hbm.at[pl.ds(idx, 1), :],     # (1, d) HBM row
            out_ref.at[pl.ds(r, 1), :],          # (1, d) slot in the out block
            sem.at[0],
        ).start()
        return carry

    lax.fori_loop(0, tg, issue, 0)

    def drain(r, carry):
        # Wait descriptor has the same shape as each issued copy (shared sem).
        pltpu.make_async_copy(
            coarse_hbm.at[pl.ds(0, 1), :],
            out_ref.at[pl.ds(0, 1), :],
            sem.at[0],
        ).wait()
        return carry

    lax.fori_loop(0, tg, drain, 0)


def _unpool_dma_gather(coarse_feature: jax.Array, cluster: jax.Array,
                       budget: int) -> jax.Array:
    n_fine = cluster.shape[0]
    n_coarse, d = coarse_feature.shape
    dtype = coarse_feature.dtype
    itemsize = jnp.dtype(dtype).itemsize

    sub = _sublane_multiple(dtype)
    d_pad = _round_up(d, 128)                      # VMEM lane footprint
    tg = _balanced_tile(n_fine, 256, sub)
    # Keep the double-buffered output block comfortably inside VMEM.
    max_tg = max(sub, ((budget // 4) // max(d_pad * itemsize, 1)) // sub * sub)
    tg = max(sub, min(tg, max_tg))

    num_tiles = _cdiv(n_fine, tg)
    n_fine_pad = num_tiles * tg
    cluster_pad = jnp.zeros((n_fine_pad,), jnp.int32)
    cluster_pad = cluster_pad.at[:n_fine].set(cluster.astype(jnp.int32))

    vmem_limit = int(min(budget,
                         max(2 * tg * d_pad * itemsize + (4 << 20), 32 << 20)))

    # TODO(synk): for very large n_fine the SMEM-prefetched cluster vector
    # (4*n_fine bytes) should be chunked at the JAX level.
    return pl.pallas_call(
        _gather_tile_kernel,
        out_shape=jax.ShapeDtypeStruct((n_fine, d), dtype),
        grid_spec=pltpu.PrefetchScalarGridSpec(
            num_scalar_prefetch=1,                 # cluster -> SMEM
            grid=(num_tiles,),
            in_specs=[pl.BlockSpec(memory_space=pl.ANY)],   # coarse stays in HBM
            out_specs=pl.BlockSpec((tg, d), lambda i, cl: (i, 0)),
            scratch_shapes=[pltpu.SemaphoreType.DMA((1,))],
        ),
        compiler_params=pltpu.CompilerParams(
            dimension_semantics=("parallel",),
            vmem_limit_bytes=vmem_limit,
        ),
    )(cluster_pad, coarse_feature)


# --------------------------------------------------------------------------
# Public entry point.
# --------------------------------------------------------------------------
def unpool_graph(coarse_feature: jax.Array, cluster: jax.Array) -> jax.Array:
    """fine_feature[i, :] = coarse_feature[cluster[i], :]

    Note: out-of-range cluster indices are not supported (the resident path
    would write zero rows, the DMA path would fault); callers must pass valid
    fine->coarse assignments, as torch_geometric pooling does.
    """
    n_coarse, d = coarse_feature.shape
    n_fine = cluster.shape[0]
    dtype = coarse_feature.dtype
    itemsize = jnp.dtype(dtype).itemsize

    budget = _vmem_budget_bytes()
    sub = _sublane_multiple(dtype)
    tq = _balanced_tile(n_fine, 512, sub)

    d_pad = _round_up(d, 128)
    nc_pad = _round_up(n_coarse, 128)
    vmem_needed = (
        2 * n_coarse * d_pad * itemsize      # resident coarse (2 pipeline bufs)
        + 2 * tq * d_pad * itemsize          # double-buffered output blocks
        + 2 * tq * 128 * 4                   # lane-padded (tq,1) int32 cluster blocks
        + tq * nc_pad * 4                    # one-hot temporary (f32 worst case)
        + tq * d_pad * 4                     # f32 dot accumulator
        + (2 << 20)                          # margin for Mosaic internal scratch
    )

    if n_coarse <= _max_matmul_coarse(dtype) and vmem_needed <= budget:
        vmem_limit = int(min(budget, max(vmem_needed, 32 << 20)))
        return _unpool_resident(coarse_feature, cluster, tq, vmem_limit)
    return _unpool_dma_gather(coarse_feature, cluster, budget)


if __name__ == "__main__":
    key = jax.random.PRNGKey(0)
    k1, k2, k3, k4, k5, k6 = jax.random.split(key, 6)

    # --- Test 1: resident MXU path, f32, ragged d and fine count -----------
    n_coarse, n_fine, d = 8, 22, 96
    coarse_f32 = jax.random.normal(k1, (n_coarse, d), dtype=jnp.float32)
    cluster_1 = jax.random.randint(k2, (n_fine,), 0, n_coarse, dtype=jnp.int32)
    out1 = jax.block_until_ready(unpool_graph(coarse_f32, cluster_1))
    ref1 = jnp.take(coarse_f32, cluster_1, axis=0)
    assert out1.shape == (n_fine, d) and out1.dtype == coarse_f32.dtype
    assert jnp.allclose(out1, ref1), "resident f32 unpool mismatch"

    # --- Test 2: resident MXU path, bf16 (native MXU rate branch) ----------
    n_coarse, n_fine, d = 16, 40, 128
    coarse_bf16 = jax.random.normal(k3, (n_coarse, d), dtype=jnp.float32).astype(jnp.bfloat16)
    cluster_2 = jax.random.randint(k4, (n_fine,), 0, n_coarse, dtype=jnp.int32)
    out2 = jax.block_until_ready(unpool_graph(coarse_bf16, cluster_2))
    ref2 = jnp.take(coarse_bf16, cluster_2, axis=0)
    assert out2.shape == (n_fine, d) and out2.dtype == coarse_bf16.dtype
    assert jnp.allclose(out2.astype(jnp.float32), ref2.astype(jnp.float32)), \
        "resident bf16 unpool mismatch"

    # --- Test 3: DMA-gather fallback (n_coarse above the MXU roofline gate) -
    n_coarse, n_fine, d = 320, 300, 128
    coarse_big = jax.random.normal(k5, (n_coarse, d), dtype=jnp.float32)
    cluster_3 = jax.random.randint(k6, (n_fine,), 0, n_coarse, dtype=jnp.int32)
    out3 = jax.block_until_ready(unpool_graph(coarse_big, cluster_3))
    ref3 = jnp.take(coarse_big, cluster_3, axis=0)
    assert out3.shape == (n_fine, d) and out3.dtype == coarse_big.dtype
    assert jnp.allclose(out3, ref3), "DMA-gather unpool mismatch"

    print("KERNEL_OK")
</pallas_src>

<mosaic_0001>
module attributes {stable_mosaic.version = 11 : i64} {
  func.func @_unpool_tile_kernel(%arg0: i32, %arg1: memref<24x1xi32, #tpu.memory_space<vmem>>, %arg2: memref<8x96xf32, #tpu.memory_space<vmem>>, %arg3: memref<24x96xf32, #tpu.memory_space<vmem>>) attributes {dimension_semantics = [#tpu.dimension_semantics<parallel>], iteration_bounds = array<i64: 1>, scalar_prefetch = 0 : i64, scratch_operands = 0 : i64, tpu.core_type = #tpu.core_type<tc>, window_params = [{transform_indices = @transform_0, window_bounds = array<i64: 24, 1>}, {pipeline_mode = #tpu.pipeline_mode<synchronous>, transform_indices = @transform_1, window_bounds = array<i64: 8, 96>}, {transform_indices = @transform_2, window_bounds = array<i64: 24, 96>}]} {
    %c0 = arith.constant 0 : index
    %c0_0 = arith.constant 0 : index
    %0 = vector.load %arg1[%c0, %c0_0] : memref<24x1xi32, #tpu.memory_space<vmem>>, vector<24x1xi32>
    %1 = tpu.iota {dimensions = array<i32: 1>} : vector<24x8xi32>
    %2 = vector.broadcast %0 : vector<24x1xi32> to vector<24x8xi32>
    %3 = arith.cmpi eq, %2, %1 : vector<24x8xi32>
    %4 = arith.extui %3 : vector<24x8xi1> to vector<24x8xi32>
    %5 = arith.sitofp %4 : vector<24x8xi32> to vector<24x8xf32>
    %c0_1 = arith.constant 0 : index
    %c0_2 = arith.constant 0 : index
    %6 = vector.load %arg2[%c0_1, %c0_2] : memref<8x96xf32, #tpu.memory_space<vmem>>, vector<8x96xf32>
    %cst = arith.constant dense<0.000000e+00> : vector<24x96xf32>
    %7 = tpu.matmul %5, %6, %cst {dimension_numbers = #tpu.dot_dimension_numbers<[1], [0], [0], [1], [0, 0, 1, 1], [], []>, precision = #tpu.contract_precision<fp32>} : vector<24x8xf32>, vector<8x96xf32>, vector<24x96xf32> -> vector<24x96xf32>
    %c0_3 = arith.constant 0 : index
    %c0_4 = arith.constant 0 : index
    %8 = vector.load %arg3[%c0_3, %c0_4] : memref<24x96xf32, #tpu.memory_space<vmem>>, vector<24x96xf32>
    tpu.vector_store %arg3[%c0_3, %c0_4], %7 {strides = array<i32>} : memref<24x96xf32, #tpu.memory_space<vmem>>, vector<24x96xf32>,
    return
  }
  func.func @transform_0(%arg0: i32) -> (i32, i32) {
    %c0_i32 = arith.constant 0 : i32
    %c0_i32_0 = arith.constant 0 : i32
    return %arg0, %c0_i32 : i32, i32
  }
  func.func @transform_1(%arg0: i32) -> (i32, i32) {
    %c0_i32 = arith.constant 0 : i32
    %c0_i32_0 = arith.constant 0 : i32
    %c0_i32_1 = arith.constant 0 : i32
    return %c0_i32, %c0_i32_0 : i32, i32
  }
  func.func @transform_2(%arg0: i32) -> (i32, i32) {
    %c0_i32 = arith.constant 0 : i32
    %c0_i32_0 = arith.constant 0 : i32
    return %arg0, %c0_i32 : i32, i32
  }
}

</mosaic_0001>

<llo_original>
// kernel: tpu_custom_call.1
$region0: #{tpu_custom_call.1}
  #allocation0 [shape = 'u32[]', space=smem, size = 0x4, offset = 0x4, fixed_abs, tag = 'smem constant byte address 0x4 - core index']
  #allocation1 [shape = 'u32[144,128]{1,0:T(1,128)}', space=vmem, size = 0x12000, scoped, tag = 'internal scratch']
  %s0 = inlined_call_operand.vmem [shape: s32[24,1], index: 0, kind: input, shape index: {}]
  %s1 = inlined_call_operand.vmem [shape: f32[8,96], index: 1, kind: input, shape index: {}]
  %s2 = inlined_call_operand.hbm [shape: f32[22,96], index: 2, kind: output, shape index: {}]
  %s3 = sld [smem:[#allocation0]]
  $region18: #{tpu_custom_call.1} parent=0
    _
  %s5 = ssub.s32 1, %s3
  %s6 = scalar_select 0, %s5, %s3
  $region1: #{tpu_custom_call.1} parent=0
    #allocation2 [shape = 'u8[12288]{0}', space=vmem, size = 0x3000, scoped, tag = 'output window, operand 0, single buffered']
    #allocation3 [shape = 's32[1]{0}', space=sflag, size = 0x4, scoped, tag = 'scoped memory for tpu_custom_call.1']
    %7 = vsyncpa [#allocation3], 0
    // Predicated region
    $region2: #{tpu_custom_call.1} parent=1 // pred_check
      _
    $region3: #{tpu_custom_call.1} parent=1 // pred_check_branch
      %9 = sbr.rel (0) target = $region5
    $region4: #{tpu_custom_call.1} parent=1 // pred_region
      _
    $region5: #{tpu_custom_call.1} parent=1 // pred_fallthru
      _
    // Predicated region
    $region6: #{tpu_custom_call.1} parent=1 // pred_check
      _
    $region7: #{tpu_custom_call.1} parent=1 // pred_check_branch
      %11 = sbr.rel (0) target = $region9
    $region8: #{tpu_custom_call.1} parent=1 // pred_region
      _
    $region9: #{tpu_custom_call.1} parent=1 // pred_fallthru
      _
    %v12 = vld [vmem:[%s0] sm:$0xff]
    %v13 = vld [vmem:[%s0 + $0x8] sm:$0xff]
    %v14 = vld [vmem:[%s0 + $0x10] sm:$0xff]
    %v15 = vlaneseq
    %v16 = vand.u32 %v15, 127
    %17 = vset.pattern.permute.xlu0 0
    %18 = vperm.xlu0 %17, %v12
    %v19 = vpop.permute.xlu0 %18
    %20 = vset.pattern.permute.xlu0 0
    %21 = vperm.xlu0 %20, %v13
    %v22 = vpop.permute.xlu0 %21
    %23 = vset.pattern.permute.xlu0 0
    %24 = vperm.xlu0 %23, %v14
    %v25 = vpop.permute.xlu0 %24
    %vm26 = vcmp.eq.s32.totalorder %v19, %v16
    %vm27 = vcmp.eq.s32.totalorder %v22, %v16
    %vm28 = vcmp.eq.s32.totalorder %v25, %v16
    %v29 = vsel %vm26, 1, 0
    %v30 = vsel %vm27, 1, 0
    %v31 = vsel %vm28, 1, 0
    %v32 = vcvt.s32.f32 %v29
    %v33 = vcvt.s32.f32 %v30
    %v34 = vcvt.s32.f32 %v31
    %v35 = vld [vmem:[%s1] sm:$0xff]
    %vm36 = vcmask 64512
    %v38 = vsel %vm36, %v32, 0
    %v41 = vsel %vm36, %v33, 0
    %v44 = vsel %vm36, %v34, 0
    %46 = vmatprep.subr.mxu0 0.0
    %47 = vmatpush1.msra.mxu0 0.0
    %48 = vmatprep.subr.mxu0 0.0
    %49 = vmatpush1.msra.mxu0 0.0
    %50 = vmatprep.subr.mxu0 0.0
    %51 = vmatpush1.msra.mxu0 0.0
    %52 = vmatprep.subr.mxu0 0.0
    %53 = vmatpush1.msra.mxu0 0.0
    %54 = vmatprep.subr.mxu0 0.0
    %55 = vmatpush1.msra.mxu0 0.0
    %56 = vmatprep.subr.mxu0 0.0
    %57 = vmatpush1.msra.mxu0 0.0
    %58 = vmatprep.subr.mxu0 0.0
    %59 = vmatpush1.msra.mxu0 0.0
    %60 = vmatprep.subr.mxu0 0.0
    %61 = vmatpush1.msra.mxu0 0.0
    %62 = vmatprep.subr.mxu0 0.0
    %63 = vmatpush1.msra.mxu0 0.0
    %64 = vmatprep.subr.mxu0 0.0
    %65 = vmatpush1.msra.mxu0 0.0
    %66 = vmatprep.subr.mxu0 0.0
    %67 = vmatpush1.msra.mxu0 0.0
    %68 = vmatprep.subr.mxu0 0.0
    %69 = vmatpush1.msra.mxu0 0.0
    %70 = vmatprep.subr.mxu0 0.0
    %71 = vmatpush1.msra.mxu0 0.0
    %72 = vmatprep.subr.mxu0 0.0
    %73 = vmatpush1.msra.mxu0 0.0
    %74 = vmatprep.subr.mxu0 0.0
    %75 = vmatpush1.msra.mxu0 0.0
    %76 = vmatprep.subr.mxu0 0.0
    %v77 = vand.u32 %v35, 4294901760
    %78 = vmatpush1.msra.mxu0 %v77
    %79 = vmatprep.subr.mxu0 0.0
    %80 = vmatpush2.msra.mxu0 0.0
    %81 = vmatprep.subr.mxu0 0.0
    %82 = vmatpush2.msra.mxu0 0.0
    %83 = vmatprep.subr.mxu0 0.0
    %84 = vmatpush2.msra.mxu0 0.0
    %85 = vmatprep.subr.mxu0 0.0
    %86 = vmatpush2.msra.mxu0 0.0
    %87 = vmatprep.subr.mxu0 0.0
    %88 = vmatpush2.msra.mxu0 0.0
    %89 = vmatprep.subr.mxu0 0.0
    %90 = vmatpush2.msra.mxu0 0.0
    %91 = vmatprep.subr.mxu0 0.0
    %92 = vmatpush2.msra.mxu0 0.0
    %93 = vmatprep.subr.mxu0 0.0
    %94 = vmatpush2.msra.mxu0 0.0
    %95 = vmatprep.subr.mxu0 0.0
    %96 = vmatpush2.msra.mxu0 0.0
    %97 = vmatprep.subr.mxu0 0.0
    %98 = vmatpush2.msra.mxu0 0.0
    %99 = vmatprep.subr.mxu0 0.0
    %100 = vmatpush2.msra.mxu0 0.0
    %101 = vmatprep.subr.mxu0 0.0
    %102 = vmatpush2.msra.mxu0 0.0
    %103 = vmatprep.subr.mxu0 0.0
    %104 = vmatpush2.msra.mxu0 0.0
    %105 = vmatprep.subr.mxu0 0.0
    %106 = vmatpush2.msra.mxu0 0.0
    %107 = vmatprep.subr.mxu0 0.0
    %108 = vmatpush2.msra.mxu0 0.0
    %109 = vmatprep.subr.mxu0 0.0
    %110 = vmatpush2.msra.mxu0 0.0
    %111 = vmatprep.mubr.f32.mxu0 0.0
    %v112 = vand.u32 %v38, 4294901760
    %v113 = vsub.f32 %v38, %v112
    %v114 = vand.u32 %v113, 4294901760
    %v115 = vsub.f32 %v113, %v114
    %v116 = vand.u32 %v115, 4294901760
    %117 = vmatmul.mubr.f32.gmra.mxu0 %v116
    %v118 = vpop.f32.mrf.mxu0
    %v119 = vadd.f32 0.0, %v118
    %v120 = vpop.f32.mrf.mxu0
    %121 = vmatprep.mubr.f32.mxu0 0.0
    %v122 = vand.u32 %v41, 4294901760
    %v123 = vsub.f32 %v41, %v122
    %v124 = vand.u32 %v123, 4294901760
    %v125 = vsub.f32 %v123, %v124
    %v126 = vand.u32 %v125, 4294901760
    %127 = vmatmul.mubr.f32.gmra.mxu0 %v126
    %v128 = vpop.f32.mrf.mxu0
    %v129 = vadd.f32 0.0, %v128
    %v130 = vpop.f32.mrf.mxu0
    %131 = vmatprep.mubr.f32.mxu0 0.0
    %v132 = vand.u32 %v44, 4294901760
    %v133 = vsub.f32 %v44, %v132
    %v134 = vand.u32 %v133, 4294901760
    %v135 = vsub.f32 %v133, %v134
    %v136 = vand.u32 %v135, 4294901760
    %137 = vmatmul.mubr.f32.gmra.mxu0 %v136
    %v138 = vpop.f32.mrf.mxu0
    %v139 = vadd.f32 0.0, %v138
    %v140 = vpop.f32.mrf.mxu0
    %141 = vdwg.mxu0
    %142 = vmatprep.subr.mxu0 0.0
    %143 = vmatpush1.msra.mxu0 0.0
    %144 = vmatprep.subr.mxu0 0.0
    %145 = vmatpush1.msra.mxu0 0.0
    %146 = vmatprep.subr.mxu0 0.0
    %147 = vmatpush1.msra.mxu0 0.0
    %148 = vmatprep.subr.mxu0 0.0
    %149 = vmatpush1.msra.mxu0 0.0
    %150 = vmatprep.subr.mxu0 0.0
    %151 = vmatpush1.msra.mxu0 0.0
    %152 = vmatprep.subr.mxu0 0.0
    %153 = vmatpush1.msra.mxu0 0.0
    %154 = vmatprep.subr.mxu0 0.0
    %155 = vmatpush1.msra.mxu0 0.0
    %156 = vmatprep.subr.mxu0 0.0
    %157 = vmatpush1.msra.mxu0 0.0
    %158 = vmatprep.subr.mxu0 0.0
    %159 = vmatpush1.msra.mxu0 0.0
    %160 = vmatprep.subr.mxu0 0.0
    %161 = vmatpush1.msra.mxu0 0.0
    %162 = vmatprep.subr.mxu0 0.0
    %163 = vmatpush1.msra.mxu0 0.0
    %164 = vmatprep.subr.mxu0 0.0
    %165 = vmatpush1.msra.mxu0 0.0
    %166 = vmatprep.subr.mxu0 0.0
    %167 = vmatpush1.msra.mxu0 0.0
    %168 = vmatprep.subr.mxu0 0.0
    %169 = vmatpush1.msra.mxu0 0.0
    %170 = vmatprep.subr.mxu0 0.0
    %171 = vmatpush1.msra.mxu0 0.0
    %172 = vmatprep.subr.mxu0 0.0
    %v173 = vand.u32 %v35, 4294901760
    %v174 = vsub.f32 %v35, %v173
    %v175 = vand.u32 %v174, 4294901760
    %v176 = vsub.f32 %v174, %v175
    %v177 = vand.u32 %v176, 4294901760
    %178 = vmatpush1.msra.mxu0 %v177
    %179 = vmatprep.subr.mxu0 0.0
    %180 = vmatpush2.msra.mxu0 0.0
    %181 = vmatprep.subr.mxu0 0.0
    %182 = vmatpush2.msra.mxu0 0.0
    %183 = vmatprep.subr.mxu0 0.0
    %184 = vmatpush2.msra.mxu0 0.0
    %185 = vmatprep.subr.mxu0 0.0
    %186 = vmatpush2.msra.mxu0 0.0
    %187 = vmatprep.subr.mxu0 0.0
    %188 = vmatpush2.msra.mxu0 0.0
    %189 = vmatprep.subr.mxu0 0.0
    %190 = vmatpush2.msra.mxu0 0.0
    %191 = vmatprep.subr.mxu0 0.0
    %192 = vmatpush2.msra.mxu0 0.0
    %193 = vmatprep.subr.mxu0 0.0
    %194 = vmatpush2.msra.mxu0 0.0
    %195 = vmatprep.subr.mxu0 0.0
    %196 = vmatpush2.msra.mxu0 0.0
    %197 = vmatprep.subr.mxu0 0.0
    %198 = vmatpush2.msra.mxu0 0.0
    %199 = vmatprep.subr.mxu0 0.0
    %200 = vmatpush2.msra.mxu0 0.0
    %201 = vmatprep.subr.mxu0 0.0
    %202 = vmatpush2.msra.mxu0 0.0
    %203 = vmatprep.subr.mxu0 0.0
    %204 = vmatpush2.msra.mxu0 0.0
    %205 = vmatprep.subr.mxu0 0.0
    %206 = vmatpush2.msra.mxu0 0.0
    %207 = vmatprep.subr.mxu0 0.0
    %208 = vmatpush2.msra.mxu0 0.0
    %209 = vmatprep.subr.mxu0 0.0
    %210 = vmatpush2.msra.mxu0 0.0
    %211 = vmatprep.mubr.f32.mxu0 0.0
    %v212 = vand.u32 %v38, 4294901760
    %213 = vmatmul.mubr.f32.gmra.mxu0 %v212
    %v214 = vpop.f32.mrf.mxu0
    %v215 = vadd.f32 %v119, %v214
    %v216 = vpop.f32.mrf.mxu0
    %217 = vmatprep.mubr.f32.mxu0 0.0
    %v218 = vand.u32 %v41, 4294901760
    %219 = vmatmul.mubr.f32.gmra.mxu0 %v218
    %v220 = vpop.f32.mrf.mxu0
    %v221 = vadd.f32 %v129, %v220
    %v222 = vpop.f32.mrf.mxu0
    %223 = vmatprep.mubr.f32.mxu0 0.0
    %v224 = vand.u32 %v44, 4294901760
    %225 = vmatmul.mubr.f32.gmra.mxu0 %v224
    %v226 = vpop.f32.mrf.mxu0
    %v227 = vadd.f32 %v139, %v226
    %v228 = vpop.f32.mrf.mxu0
    %229 = vdwg.mxu0
    %230 = vmatprep.subr.mxu0 0.0
    %231 = vmatpush1.msra.mxu0 0.0
    %232 = vmatprep.subr.mxu0 0.0
    %233 = vmatpush1.msra.mxu0 0.0
    %234 = vmatprep.subr.mxu0 0.0
    %235 = vmatpush1.msra.mxu0 0.0
    %236 = vmatprep.subr.mxu0 0.0
    %237 = vmatpush1.msra.mxu0 0.0
    %238 = vmatprep.subr.mxu0 0.0
    %239 = vmatpush1.msra.mxu0 0.0
    %240 = vmatprep.subr.mxu0 0.0
    %241 = vmatpush1.msra.mxu0 0.0
    %242 = vmatprep.subr.mxu0 0.0
    %243 = vmatpush1.msra.mxu0 0.0
    %244 = vmatprep.subr.mxu0 0.0
    %245 = vmatpush1.msra.mxu0 0.0
    %246 = vmatprep.subr.mxu0 0.0
    %247 = vmatpush1.msra.mxu0 0.0
    %248 = vmatprep.subr.mxu0 0.0
    %249 = vmatpush1.msra.mxu0 0.0
    %250 = vmatprep.subr.mxu0 0.0
    %251 = vmatpush1.msra.mxu0 0.0
    %252 = vmatprep.subr.mxu0 0.0
    %253 = vmatpush1.msra.mxu0 0.0
    %254 = vmatprep.subr.mxu0 0.0
    %255 = vmatpush1.msra.mxu0 0.0
    %256 = vmatprep.subr.mxu0 0.0
    %257 = vmatpush1.msra.mxu0 0.0
    %258 = vmatprep.subr.mxu0 0.0
    %259 = vmatpush1.msra.mxu0 0.0
    %260 = vmatprep.subr.mxu0 0.0
    %v261 = vand.u32 %v35, 4294901760
    %v262 = vsub.f32 %v35, %v261
    %263 = vmatpush1.msra.mxu0 %v262
    %264 = vmatprep.subr.mxu0 0.0
    %265 = vmatpush2.msra.mxu0 0.0
    %266 = vmatprep.subr.mxu0 0.0
    %267 = vmatpush2.msra.mxu0 0.0
    %268 = vmatprep.subr.mxu0 0.0
    %269 = vmatpush2.msra.mxu0 0.0
    %270 = vmatprep.subr.mxu0 0.0
    %271 = vmatpush2.msra.mxu0 0.0
    %272 = vmatprep.subr.mxu0 0.0
    %273 = vmatpush2.msra.mxu0 0.0
    %274 = vmatprep.subr.mxu0 0.0
    %275 = vmatpush2.msra.mxu0 0.0
    %276 = vmatprep.subr.mxu0 0.0
    %277 = vmatpush2.msra.mxu0 0.0
    %278 = vmatprep.subr.mxu0 0.0
    %279 = vmatpush2.msra.mxu0 0.0
    %280 = vmatprep.subr.mxu0 0.0
    %281 = vmatpush2.msra.mxu0 0.0
    %282 = vmatprep.subr.mxu0 0.0
    %283 = vmatpush2.msra.mxu0 0.0
    %284 = vmatprep.subr.mxu0 0.0
    %285 = vmatpush2.msra.mxu0 0.0
    %286 = vmatprep.subr.mxu0 0.0
    %287 = vmatpush2.msra.mxu0 0.0
    %288 = vmatprep.subr.mxu0 0.0
    %289 = vmatpush2.msra.mxu0 0.0
    %290 = vmatprep.subr.mxu0 0.0
    %291 = vmatpush2.msra.mxu0 0.0
    %292 = vmatprep.subr.mxu0 0.0
    %293 = vmatpush2.msra.mxu0 0.0
    %294 = vmatprep.subr.mxu0 0.0
    %295 = vmatpush2.msra.mxu0 0.0
    %296 = vmatprep.mubr.f32.mxu0 0.0
    %v297 = vand.u32 %v38, 4294901760
    %v298 = vsub.f32 %v38, %v297
    %299 = vmatmul.mubr.f32.gmra.mxu0 %v298
    %v300 = vpop.f32.mrf.mxu0
    %v301 = vadd.f32 %v215, %v300
    %v302 = vpop.f32.mrf.mxu0
    %303 = vmatprep.mubr.f32.mxu0 0.0
    %v304 = vand.u32 %v41, 4294901760
    %v305 = vsub.f32 %v41, %v304
    %306 = vmatmul.mubr.f32.gmra.mxu0 %v305
    %v307 = vpop.f32.mrf.mxu0
    %v308 = vadd.f32 %v221, %v307
    %v309 = vpop.f32.mrf.mxu0
    %310 = vmatprep.mubr.f32.mxu0 0.0
    %v311 = vand.u32 %v44, 4294901760
    %v312 = vsub.f32 %v44, %v311
    %313 = vmatmul.mubr.f32.gmra.mxu0 %v312
    %v314 = vpop.f32.mrf.mxu0
    %v315 = vadd.f32 %v227, %v314
    %v316 = vpop.f32.mrf.mxu0
    %317 = vdwg.mxu0
    %318 = vmatprep.subr.mxu0 0.0
    %319 = vmatpush1.msra.mxu0 0.0
    %320 = vmatprep.subr.mxu0 0.0
    %321 = vmatpush1.msra.mxu0 0.0
    %322 = vmatprep.subr.mxu0 0.0
    %323 = vmatpush1.msra.mxu0 0.0
    %324 = vmatprep.subr.mxu0 0.0
    %325 = vmatpush1.msra.mxu0 0.0
    %326 = vmatprep.subr.mxu0 0.0
    %327 = vmatpush1.msra.mxu0 0.0
    %328 = vmatprep.subr.mxu0 0.0
    %329 = vmatpush1.msra.mxu0 0.0
    %330 = vmatprep.subr.mxu0 0.0
    %331 = vmatpush1.msra.mxu0 0.0
    %332 = vmatprep.subr.mxu0 0.0
    %333 = vmatpush1.msra.mxu0 0.0
    %334 = vmatprep.subr.mxu0 0.0
    %335 = vmatpush1.msra.mxu0 0.0
    %336 = vmatprep.subr.mxu0 0.0
    %337 = vmatpush1.msra.mxu0 0.0
    %338 = vmatprep.subr.mxu0 0.0
    %339 = vmatpush1.msra.mxu0 0.0
    %340 = vmatprep.subr.mxu0 0.0
    %341 = vmatpush1.msra.mxu0 0.0
    %342 = vmatprep.subr.mxu0 0.0
    %343 = vmatpush1.msra.mxu0 0.0
    %344 = vmatprep.subr.mxu0 0.0
    %345 = vmatpush1.msra.mxu0 0.0
    %346 = vmatprep.subr.mxu0 0.0
    %347 = vmatpush1.msra.mxu0 0.0
    %348 = vmatprep.subr.mxu0 0.0
    %v349 = vand.u32 %v35, 4294901760
    %350 = vmatpush1.msra.mxu0 %v349
    %351 = vmatprep.subr.mxu0 0.0
    %352 = vmatpush2.msra.mxu0 0.0
    %353 = vmatprep.subr.mxu0 0.0
    %354 = vmatpush2.msra.mxu0 0.0
    %355 = vmatprep.subr.mxu0 0.0
    %356 = vmatpush2.msra.mxu0 0.0
    %357 = vmatprep.subr.mxu0 0.0
    %358 = vmatpush2.msra.mxu0 0.0
    %359 = vmatprep.subr.mxu0 0.0
    %360 = vmatpush2.msra.mxu0 0.0
    %361 = vmatprep.subr.mxu0 0.0
    %362 = vmatpush2.msra.mxu0 0.0
    %363 = vmatprep.subr.mxu0 0.0
    %364 = vmatpush2.msra.mxu0 0.0
    %365 = vmatprep.subr.mxu0 0.0
    %366 = vmatpush2.msra.mxu0 0.0
    %367 = vmatprep.subr.mxu0 0.0
    %368 = vmatpush2.msra.mxu0 0.0
    %369 = vmatprep.subr.mxu0 0.0
    %370 = vmatpush2.msra.mxu0 0.0
    %371 = vmatprep.subr.mxu0 0.0
    %372 = vmatpush2.msra.mxu0 0.0
    %373 = vmatprep.subr.mxu0 0.0
    %374 = vmatpush2.msra.mxu0 0.0
    %375 = vmatprep.subr.mxu0 0.0
    %376 = vmatpush2.msra.mxu0 0.0
    %377 = vmatprep.subr.mxu0 0.0
    %378 = vmatpush2.msra.mxu0 0.0
    %379 = vmatprep.subr.mxu0 0.0
    %380 = vmatpush2.msra.mxu0 0.0
    %381 = vmatprep.subr.mxu0 0.0
    %382 = vmatpush2.msra.mxu0 0.0
    %383 = vmatprep.mubr.f32.mxu0 0.0
    %v384 = vand.u32 %v38, 4294901760
    %v385 = vsub.f32 %v38, %v384
    %v386 = vand.u32 %v385, 4294901760
    %387 = vmatmul.mubr.f32.gmra.mxu0 %v386
    %v388 = vpop.f32.mrf.mxu0
    %v389 = vadd.f32 %v301, %v388
    %v390 = vpop.f32.mrf.mxu0
    %391 = vmatprep.mubr.f32.mxu0 0.0
    %v392 = vand.u32 %v41, 4294901760
    %v393 = vsub.f32 %v41, %v392
    %v394 = vand.u32 %v393, 4294901760
    %395 = vmatmul.mubr.f32.gmra.mxu0 %v394
    %v396 = vpop.f32.mrf.mxu0
    %v397 = vadd.f32 %v308, %v396
    %v398 = vpop.f32.mrf.mxu0
    %399 = vmatprep.mubr.f32.mxu0 0.0
    %v400 = vand.u32 %v44, 4294901760
    %v401 = vsub.f32 %v44, %v400
    %v402 = vand.u32 %v401, 4294901760
    %403 = vmatmul.mubr.f32.gmra.mxu0 %v402
    %v404 = vpop.f32.mrf.mxu0
    %v405 = vadd.f32 %v315, %v404
    %v406 = vpop.f32.mrf.mxu0
    %407 = vdwg.mxu0
    %408 = vmatprep.subr.mxu0 0.0
    %409 = vmatpush1.msra.mxu0 0.0
    %410 = vmatprep.subr.mxu0 0.0
    %411 = vmatpush1.msra.mxu0 0.0
    %412 = vmatprep.subr.mxu0 0.0
    %413 = vmatpush1.msra.mxu0 0.0
    %414 = vmatprep.subr.mxu0 0.0
    %415 = vmatpush1.msra.mxu0 0.0
    %416 = vmatprep.subr.mxu0 0.0
    %417 = vmatpush1.msra.mxu0 0.0
    %418 = vmatprep.subr.mxu0 0.0
    %419 = vmatpush1.msra.mxu0 0.0
    %420 = vmatprep.subr.mxu0 0.0
    %421 = vmatpush1.msra.mxu0 0.0
    %422 = vmatprep.subr.mxu0 0.0
    %423 = vmatpush1.msra.mxu0 0.0
    %424 = vmatprep.subr.mxu0 0.0
    %425 = vmatpush1.msra.mxu0 0.0
    %426 = vmatprep.subr.mxu0 0.0
    %427 = vmatpush1.msra.mxu0 0.0
    %428 = vmatprep.subr.mxu0 0.0
    %429 = vmatpush1.msra.mxu0 0.0
    %430 = vmatprep.subr.mxu0 0.0
    %431 = vmatpush1.msra.mxu0 0.0
    %432 = vmatprep.subr.mxu0 0.0
    %433 = vmatpush1.msra.mxu0 0.0
    %434 = vmatprep.subr.mxu0 0.0
    %435 = vmatpush1.msra.mxu0 0.0
    %436 = vmatprep.subr.mxu0 0.0
    %437 = vmatpush1.msra.mxu0 0.0
    %438 = vmatprep.subr.mxu0 0.0
    %v439 = vand.u32 %v35, 4294901760
    %v440 = vsub.f32 %v35, %v439
    %v441 = vand.u32 %v440, 4294901760
    %442 = vmatpush1.msra.mxu0 %v441
    %443 = vmatprep.subr.mxu0 0.0
    %444 = vmatpush2.msra.mxu0 0.0
    %445 = vmatprep.subr.mxu0 0.0
    %446 = vmatpush2.msra.mxu0 0.0
    %447 = vmatprep.subr.mxu0 0.0
    %448 = vmatpush2.msra.mxu0 0.0
    %449 = vmatprep.subr.mxu0 0.0
    %450 = vmatpush2.msra.mxu0 0.0
    %451 = vmatprep.subr.mxu0 0.0
    %452 = vmatpush2.msra.mxu0 0.0
    %453 = vmatprep.subr.mxu0 0.0
    %454 = vmatpush2.msra.mxu0 0.0
    %455 = vmatprep.subr.mxu0 0.0
    %456 = vmatpush2.msra.mxu0 0.0
    %457 = vmatprep.subr.mxu0 0.0
    %458 = vmatpush2.msra.mxu0 0.0
    %459 = vmatprep.subr.mxu0 0.0
    %460 = vmatpush2.msra.mxu0 0.0
    %461 = vmatprep.subr.mxu0 0.0
    %462 = vmatpush2.msra.mxu0 0.0
    %463 = vmatprep.subr.mxu0 0.0
    %464 = vmatpush2.msra.mxu0 0.0
    %465 = vmatprep.subr.mxu0 0.0
    %466 = vmatpush2.msra.mxu0 0.0
    %467 = vmatprep.subr.mxu0 0.0
    %468 = vmatpush2.msra.mxu0 0.0
    %469 = vmatprep.subr.mxu0 0.0
    %470 = vmatpush2.msra.mxu0 0.0
    %471 = vmatprep.subr.mxu0 0.0
    %472 = vmatpush2.msra.mxu0 0.0
    %473 = vmatprep.subr.mxu0 0.0
    %474 = vmatpush2.msra.mxu0 0.0
    %475 = vmatprep.mubr.f32.mxu0 0.0
    %v476 = vand.u32 %v38, 4294901760
    %477 = vmatmul.mubr.f32.gmra.mxu0 %v476
    %v478 = vpop.f32.mrf.mxu0
    %v479 = vadd.f32 %v389, %v478
    %v480 = vpop.f32.mrf.mxu0
    %481 = vmatprep.mubr.f32.mxu0 0.0
    %v482 = vand.u32 %v41, 4294901760
    %483 = vmatmul.mubr.f32.gmra.mxu0 %v482
    %v484 = vpop.f32.mrf.mxu0
    %v485 = vadd.f32 %v397, %v484
    %v486 = vpop.f32.mrf.mxu0
    %487 = vmatprep.mubr.f32.mxu0 0.0
    %v488 = vand.u32 %v44, 4294901760
    %489 = vmatmul.mubr.f32.gmra.mxu0 %v488
    %v490 = vpop.f32.mrf.mxu0
    %v491 = vadd.f32 %v405, %v490
    %v492 = vpop.f32.mrf.mxu0
    %493 = vdwg.mxu0
    %494 = vmatprep.subr.mxu0 0.0
    %495 = vmatpush1.msra.mxu0 0.0
    %496 = vmatprep.subr.mxu0 0.0
    %497 = vmatpush1.msra.mxu0 0.0
    %498 = vmatprep.subr.mxu0 0.0
    %499 = vmatpush1.msra.mxu0 0.0
    %500 = vmatprep.subr.mxu0 0.0
    %501 = vmatpush1.msra.mxu0 0.0
    %502 = vmatprep.subr.mxu0 0.0
    %503 = vmatpush1.msra.mxu0 0.0
    %504 = vmatprep.subr.mxu0 0.0
    %505 = vmatpush1.msra.mxu0 0.0
    %506 = vmatprep.subr.mxu0 0.0
    %507 = vmatpush1.msra.mxu0 0.0
    %508 = vmatprep.subr.mxu0 0.0
    %509 = vmatpush1.msra.mxu0 0.0
    %510 = vmatprep.subr.mxu0 0.0
    %511 = vmatpush1.msra.mxu0 0.0
    %512 = vmatprep.subr.mxu0 0.0
    %513 = vmatpush1.msra.mxu0 0.0
    %514 = vmatprep.subr.mxu0 0.0
    %515 = vmatpush1.msra.mxu0 0.0
    %516 = vmatprep.subr.mxu0 0.0
    %517 = vmatpush1.msra.mxu0 0.0
    %518 = vmatprep.subr.mxu0 0.0
    %519 = vmatpush1.msra.mxu0 0.0
    %520 = vmatprep.subr.mxu0 0.0
    %521 = vmatpush1.msra.mxu0 0.0
    %522 = vmatprep.subr.mxu0 0.0
    %523 = vmatpush1.msra.mxu0 0.0
    %524 = vmatprep.subr.mxu0 0.0
    %v525 = vand.u32 %v35, 4294901760
    %526 = vmatpush1.msra.mxu0 %v525
    %527 = vmatprep.subr.mxu0 0.0
    %528 = vmatpush2.msra.mxu0 0.0
    %529 = vmatprep.subr.mxu0 0.0
    %530 = vmatpush2.msra.mxu0 0.0
    %531 = vmatprep.subr.mxu0 0.0
    %532 = vmatpush2.msra.mxu0 0.0
    %533 = vmatprep.subr.mxu0 0.0
    %534 = vmatpush2.msra.mxu0 0.0
    %535 = vmatprep.subr.mxu0 0.0
    %536 = vmatpush2.msra.mxu0 0.0
    %537 = vmatprep.subr.mxu0 0.0
    %538 = vmatpush2.msra.mxu0 0.0
    %539 = vmatprep.subr.mxu0 0.0
    %540 = vmatpush2.msra.mxu0 0.0
    %541 = vmatprep.subr.mxu0 0.0
    %542 = vmatpush2.msra.mxu0 0.0
    %543 = vmatprep.subr.mxu0 0.0
    %544 = vmatpush2.msra.mxu0 0.0
    %545 = vmatprep.subr.mxu0 0.0
    %546 = vmatpush2.msra.mxu0 0.0
    %547 = vmatprep.subr.mxu0 0.0
    %548 = vmatpush2.msra.mxu0 0.0
    %549 = vmatprep.subr.mxu0 0.0
    %550 = vmatpush2.msra.mxu0 0.0
    %551 = vmatprep.subr.mxu0 0.0
    %552 = vmatpush2.msra.mxu0 0.0
    %553 = vmatprep.subr.mxu0 0.0
    %554 = vmatpush2.msra.mxu0 0.0
    %555 = vmatprep.subr.mxu0 0.0
    %556 = vmatpush2.msra.mxu0 0.0
    %557 = vmatprep.subr.mxu0 0.0
    %558 = vmatpush2.msra.mxu0 0.0
    %559 = vmatprep.mubr.f32.mxu0 0.0
    %v560 = vand.u32 %v38, 4294901760
    %561 = vmatmul.mubr.f32.gmra.mxu0 %v560
    %v562 = vpop.f32.mrf.mxu0
    %v563 = vadd.f32 %v479, %v562
    %v564 = vpop.f32.mrf.mxu0
    %565 = vmatprep.mubr.f32.mxu0 0.0
    %v566 = vand.u32 %v41, 4294901760
    %567 = vmatmul.mubr.f32.gmra.mxu0 %v566
    %v568 = vpop.f32.mrf.mxu0
    %v569 = vadd.f32 %v485, %v568
    %v570 = vpop.f32.mrf.mxu0
    %571 = vmatprep.mubr.f32.mxu0 0.0
    %v572 = vand.u32 %v44, 4294901760
    %573 = vmatmul.mubr.f32.gmra.mxu0 %v572
    %v574 = vpop.f32.mrf.mxu0
    %v575 = vadd.f32 %v491, %v574
    %v576 = vpop.f32.mrf.mxu0
    %577 = vdwg.mxu0
    %vm578 = vcmask 785408
    %579 = vst.msk [vmem:[#allocation2] sm:$0xff] %vm578, %v563
    %580 = vst.msk [vmem:[#allocation2 + $0x8] sm:$0xff] %vm578, %v569
    %581 = vst.msk [vmem:[#allocation2 + $0x10] sm:$0xff] %vm578, %v575
    // Predicated region
    $region10: #{tpu_custom_call.1} parent=1 // pred_check
      _
    $region11: #{tpu_custom_call.1} parent=1 // pred_check_branch
      %583 = sbr.rel (0) target = $region13
    $region12: #{tpu_custom_call.1} parent=1 // pred_region
      %s585 = ssub.s32 384, 384
      %586 = vsyncadd [#allocation3], %s585
      %s587 = sshll.u32 [#allocation2], 4
      %s588 = int_to_ptr.vmem [resolvable:$true] %s587
      %593 = dma.vmem_to_hbm [thread:$0]  %s588, 384, %s2, [#allocation3], 128, 128, 8
    $region13: #{tpu_custom_call.1} parent=1 // pred_fallthru
      _
    // Predicated region
    $region14: #{tpu_custom_call.1} parent=1 // pred_check
      _
    $region15: #{tpu_custom_call.1} parent=1 // pred_check_branch
      %595 = sbr.rel (0) target = $region17
    $region16: #{tpu_custom_call.1} parent=1 // pred_region
      %596 = dma.done [#allocation3], 384
    $region17: #{tpu_custom_call.1} parent=1 // pred_fallthru
      _
    %597 = vsyncpa [#allocation3], 1

</llo_original>
